<compile_context>
chip_gen: v5e
topology: v5e:2x2
jax: 0.10.0
libtpu: 0.0.40
codegen_flags: <defaults>
</compile_context>

<pallas_src>
import jax
import jax.numpy as jnp
from jax.experimental import pallas as pl
from jax.experimental.pallas import tpu as pltpu

# ---- model hyper-parameters (small, consistent with the module) -------------
EMBED_DIM = 32
HIDDEN_DIM = 32
CONTEXT_SIZE = 5           # tokens per group = context_size - 1 = 4
N_LAYERS = 3               # -> 2 hidden Linear layers + output Linear
VOCAB_SIZE = 128
BATCH = 8                  # number of context groups (rows after add_all)


def lm_kernel(tokens_ref, embed_ref, pack_ref, out_ref):
    """tokens[B,T] int32, embed[V,D], pack[max(D,H)+1, 2H+V], out[B,V] f32."""
    f32 = jnp.float32
    tokens = tokens_ref[...]                       # [B, T] int32
    B, T = tokens.shape
    V, D = embed_ref.shape
    pk = pack_ref[...]                             # [R+1, 2H + V]
    H = (pk.shape[1] - V) // 2
    R = pk.shape[0] - 1                            # bias row index
    mxu_dtype = embed_ref.dtype                    # f32 or bf16 (weight-only)

    # ---- fused "embed_tokens + add_all": multi-hot counts @ embedding table.
    # counts[b, v] = number of times token v appears in group b (handles dups).
    lane = jax.lax.broadcasted_iota(jnp.int32, (B, V), 1)
    counts = jnp.zeros((B, V), dtype=mxu_dtype)
    for t in range(T):                             # T = 4, static unroll
        counts = counts + (lane == tokens[:, t:t + 1]).astype(mxu_dtype)
    x = jnp.dot(counts, embed_ref[...], preferred_element_type=f32)     # [B, D]

    # ---- unpack the single packed weight/bias buffer (static value slices).
    w1 = pk[:D, 0:H]
    b1 = pk[R:R + 1, 0:H].astype(f32)
    w2 = pk[:H, H:2 * H]
    b2 = pk[R:R + 1, H:2 * H].astype(f32)
    wo = pk[:H, 2 * H:]
    bo = pk[R:R + 1, 2 * H:].astype(f32)

    # ---- two ReLU hidden layers + output projection (MXU, f32 accumulate).
    h = jnp.maximum(
        jnp.dot(x.astype(mxu_dtype), w1, preferred_element_type=f32) + b1, 0.0)
    h = jnp.maximum(
        jnp.dot(h.astype(mxu_dtype), w2, preferred_element_type=f32) + b2, 0.0)
    logits = jnp.dot(h.astype(mxu_dtype), wo, preferred_element_type=f32) + bo

    # ---- numerically stable log_softmax along axis=1 (kept in f32).
    m = jnp.max(logits, axis=1, keepdims=True)
    shifted = logits - m
    lse = jnp.log(jnp.sum(jnp.exp(shifted), axis=1, keepdims=True))
    out_ref[...] = (shifted - lse).astype(out_ref.dtype)


def _pack_weights(w1, b1, w2, b2, wout, bout, dtype):
    """One lane-dense [max(D,H)+1, 2H+V] buffer: weights [in,out] + bias row."""
    H, D = w1.shape
    V = wout.shape[0]
    rows = max(D, H) + 1
    pack = jnp.zeros((rows, 2 * H + V), dtype)
    pack = pack.at[:D, 0:H].set(w1.T.astype(dtype))
    pack = pack.at[rows - 1, 0:H].set(b1.astype(dtype))
    pack = pack.at[:H, H:2 * H].set(w2.T.astype(dtype))
    pack = pack.at[rows - 1, H:2 * H].set(b2.astype(dtype))
    pack = pack.at[:H, 2 * H:].set(wout.T.astype(dtype))
    pack = pack.at[rows - 1, 2 * H:].set(bout.astype(dtype))
    return pack


def language_model_forward(tokens, params, *, compute_dtype=jnp.float32):
    """tokens: int32 [B, CONTEXT_SIZE-1]; returns log-probs [B, VOCAB_SIZE].

    compute_dtype=jnp.bfloat16 gives the v6e/v7x weight-only bf16 MXU path
    (accumulation and elementwise math stay f32, which is also v5e-safe).
    """
    embed, w1, b1, w2, b2, wout, bout = params
    B, T = tokens.shape
    V, D = embed.shape
    H = w1.shape[0]

    embed_c = embed.astype(compute_dtype)
    pack = _pack_weights(w1, b1, w2, b2, wout, bout, compute_dtype)

    itemsize = jnp.dtype(compute_dtype).itemsize
    cost = pl.CostEstimate(
        flops=2 * B * (V * D + D * H + H * H + H * V),
        transcendentals=B * (V + 1),
        bytes_accessed=(tokens.size * 4 + embed_c.size * itemsize
                        + pack.size * itemsize + B * V * 4),
    )

    vmem = pl.BlockSpec(memory_space=pltpu.MemorySpace.VMEM)
    return pl.pallas_call(
        lm_kernel,
        out_shape=jax.ShapeDtypeStruct((B, V), jnp.float32),
        in_specs=[vmem, vmem, vmem],
        out_specs=vmem,
        cost_estimate=cost,
    )(tokens.astype(jnp.int32), embed_c, pack)


def reference_forward(tokens, params):
    """Pure-JAX reference matching the PyTorch forward semantics (f32)."""
    embed, w1, b1, w2, b2, wout, bout = params
    x = embed[tokens].sum(axis=1)                  # add_all over the group
    h = jnp.maximum(x @ w1.T + b1, 0.0)
    h = jnp.maximum(h @ w2.T + b2, 0.0)
    logits = h @ wout.T + bout
    return jax.nn.log_softmax(logits, axis=1)


def init_params(key):
    ks = jax.random.split(key, 7)
    # nn.Embedding default init: N(0, 1)
    embed = jax.random.normal(ks[0], (VOCAB_SIZE, EMBED_DIM), jnp.float32)

    def linear_init(kw, kb, out_dim, in_dim):
        # nn.Linear default init: U(-1/sqrt(in), 1/sqrt(in))
        bound = 1.0 / (in_dim ** 0.5)
        w = jax.random.uniform(kw, (out_dim, in_dim), jnp.float32, -bound, bound)
        b = jax.random.uniform(kb, (out_dim,), jnp.float32, -bound, bound)
        return w, b

    w1, b1 = linear_init(ks[1], ks[2], HIDDEN_DIM, EMBED_DIM)
    w2, b2 = linear_init(ks[3], ks[4], HIDDEN_DIM, HIDDEN_DIM)
    wout, bout = linear_init(ks[5], ks[6], VOCAB_SIZE, HIDDEN_DIM)
    return (embed, w1, b1, w2, b2, wout, bout)


if __name__ == "__main__":
    key = jax.random.PRNGKey(0)
    pkey, tkey = jax.random.split(key)
    params = init_params(pkey)

    # inputs: BATCH groups of (context_size - 1) token indices
    tokens = jax.random.randint(
        tkey, (BATCH, CONTEXT_SIZE - 1), 0, VOCAB_SIZE, dtype=jnp.int32)

    ref = reference_forward(tokens, params)

    # f32 path (exact match vs reference)
    out = jax.block_until_ready(language_model_forward(tokens, params))
    assert out.shape == (BATCH, VOCAB_SIZE)
    assert jnp.allclose(out, ref, atol=1e-4, rtol=1e-4), "mismatch vs reference"
    assert jnp.allclose(jnp.exp(out).sum(axis=1), 1.0, atol=1e-4)

    # weight-only bf16 MXU path (v6e/v7x fast path; elementwise math stays f32)
    out_bf16 = jax.block_until_ready(
        language_model_forward(tokens, params, compute_dtype=jnp.bfloat16))
    assert out_bf16.shape == (BATCH, VOCAB_SIZE)
    assert jnp.all(jnp.isfinite(out_bf16))
    assert jnp.allclose(jnp.exp(out_bf16).sum(axis=1), 1.0, atol=1e-3)
    assert float(jnp.max(jnp.abs(out_bf16 - ref))) < 0.25  # bf16 operand rounding

    print("KERNEL_OK")
</pallas_src>

<mosaic_0001>
module attributes {stable_mosaic.version = 11 : i64} {
  func.func @lm_kernel(%arg0: memref<8x4xi32, #tpu.memory_space<vmem>>, %arg1: memref<128x32xf32, #tpu.memory_space<vmem>>, %arg2: memref<33x192xf32, #tpu.memory_space<vmem>>, %arg3: memref<8x128xf32, #tpu.memory_space<vmem>>) attributes {dimension_semantics = [], scalar_prefetch = 0 : i64, scratch_operands = 0 : i64, tpu.core_type = #tpu.core_type<tc>} {
    %c0 = arith.constant 0 : index
    %c0_0 = arith.constant 0 : index
    %0 = vector.load %arg0[%c0, %c0_0] : memref<8x4xi32, #tpu.memory_space<vmem>>, vector<8x4xi32>
    %c0_1 = arith.constant 0 : index
    %c0_2 = arith.constant 0 : index
    %1 = vector.load %arg2[%c0_1, %c0_2] : memref<33x192xf32, #tpu.memory_space<vmem>>, vector<33x192xf32>
    %2 = tpu.iota {dimensions = array<i32: 1>} : vector<8x128xi32>
    %cst = arith.constant 0.000000e+00 : f32
    %3 = vector.broadcast %cst : f32 to vector<8x128xf32>
    %4 = vector.extract_strided_slice %0 {offsets = [0, 0], sizes = [8, 1], strides = [1, 1]} : vector<8x4xi32> to vector<8x1xi32>
    %5 = vector.broadcast %4 : vector<8x1xi32> to vector<8x128xi32>
    %6 = arith.cmpi eq, %2, %5 : vector<8x128xi32>
    %7 = arith.extui %6 : vector<8x128xi1> to vector<8x128xi32>
    %8 = arith.sitofp %7 : vector<8x128xi32> to vector<8x128xf32>
    %9 = arith.addf %3, %8 : vector<8x128xf32>
    %10 = vector.extract_strided_slice %0 {offsets = [0, 1], sizes = [8, 1], strides = [1, 1]} : vector<8x4xi32> to vector<8x1xi32>
    %11 = vector.broadcast %10 : vector<8x1xi32> to vector<8x128xi32>
    %12 = arith.cmpi eq, %2, %11 : vector<8x128xi32>
    %13 = arith.extui %12 : vector<8x128xi1> to vector<8x128xi32>
    %14 = arith.sitofp %13 : vector<8x128xi32> to vector<8x128xf32>
    %15 = arith.addf %9, %14 : vector<8x128xf32>
    %16 = vector.extract_strided_slice %0 {offsets = [0, 2], sizes = [8, 1], strides = [1, 1]} : vector<8x4xi32> to vector<8x1xi32>
    %17 = vector.broadcast %16 : vector<8x1xi32> to vector<8x128xi32>
    %18 = arith.cmpi eq, %2, %17 : vector<8x128xi32>
    %19 = arith.extui %18 : vector<8x128xi1> to vector<8x128xi32>
    %20 = arith.sitofp %19 : vector<8x128xi32> to vector<8x128xf32>
    %21 = arith.addf %15, %20 : vector<8x128xf32>
    %22 = vector.extract_strided_slice %0 {offsets = [0, 3], sizes = [8, 1], strides = [1, 1]} : vector<8x4xi32> to vector<8x1xi32>
    %23 = vector.broadcast %22 : vector<8x1xi32> to vector<8x128xi32>
    %24 = arith.cmpi eq, %2, %23 : vector<8x128xi32>
    %25 = arith.extui %24 : vector<8x128xi1> to vector<8x128xi32>
    %26 = arith.sitofp %25 : vector<8x128xi32> to vector<8x128xf32>
    %27 = arith.addf %21, %26 : vector<8x128xf32>
    %c0_3 = arith.constant 0 : index
    %c0_4 = arith.constant 0 : index
    %28 = vector.load %arg1[%c0_3, %c0_4] : memref<128x32xf32, #tpu.memory_space<vmem>>, vector<128x32xf32>
    %cst_5 = arith.constant dense<0.000000e+00> : vector<8x32xf32>
    %29 = tpu.matmul %27, %28, %cst_5 {dimension_numbers = #tpu.dot_dimension_numbers<[1], [0], [0], [1], [0, 0, 1, 1], [], []>} : vector<8x128xf32>, vector<128x32xf32>, vector<8x32xf32> -> vector<8x32xf32>
    %30 = vector.extract_strided_slice %1 {offsets = [0, 0], sizes = [32, 32], strides = [1, 1]} : vector<33x192xf32> to vector<32x32xf32>
    %31 = vector.extract_strided_slice %1 {offsets = [32, 0], sizes = [1, 32], strides = [1, 1]} : vector<33x192xf32> to vector<1x32xf32>
    %32 = vector.extract_strided_slice %1 {offsets = [0, 32], sizes = [32, 32], strides = [1, 1]} : vector<33x192xf32> to vector<32x32xf32>
    %33 = vector.extract_strided_slice %1 {offsets = [32, 32], sizes = [1, 32], strides = [1, 1]} : vector<33x192xf32> to vector<1x32xf32>
    %34 = vector.extract_strided_slice %1 {offsets = [0, 64], sizes = [32, 128], strides = [1, 1]} : vector<33x192xf32> to vector<32x128xf32>
    %35 = vector.extract_strided_slice %1 {offsets = [32, 64], sizes = [1, 128], strides = [1, 1]} : vector<33x192xf32> to vector<1x128xf32>
    %cst_6 = arith.constant dense<0.000000e+00> : vector<8x32xf32>
    %36 = tpu.matmul %29, %30, %cst_6 {dimension_numbers = #tpu.dot_dimension_numbers<[1], [0], [0], [1], [0, 0, 1, 1], [], []>} : vector<8x32xf32>, vector<32x32xf32>, vector<8x32xf32> -> vector<8x32xf32>
    %37 = vector.broadcast %31 : vector<1x32xf32> to vector<8x32xf32>
    %38 = arith.addf %36, %37 : vector<8x32xf32>
    %cst_7 = arith.constant 0.000000e+00 : f32
    %39 = vector.broadcast %cst_7 : f32 to vector<8x32xf32>
    %40 = arith.maximumf %38, %39 : vector<8x32xf32>
    %cst_8 = arith.constant dense<0.000000e+00> : vector<8x32xf32>
    %41 = tpu.matmul %40, %32, %cst_8 {dimension_numbers = #tpu.dot_dimension_numbers<[1], [0], [0], [1], [0, 0, 1, 1], [], []>} : vector<8x32xf32>, vector<32x32xf32>, vector<8x32xf32> -> vector<8x32xf32>
    %42 = vector.broadcast %33 : vector<1x32xf32> to vector<8x32xf32>
    %43 = arith.addf %41, %42 : vector<8x32xf32>
    %cst_9 = arith.constant 0.000000e+00 : f32
    %44 = vector.broadcast %cst_9 : f32 to vector<8x32xf32>
    %45 = arith.maximumf %43, %44 : vector<8x32xf32>
    %cst_10 = arith.constant dense<0.000000e+00> : vector<8x128xf32>
    %46 = tpu.matmul %45, %34, %cst_10 {dimension_numbers = #tpu.dot_dimension_numbers<[1], [0], [0], [1], [0, 0, 1, 1], [], []>} : vector<8x32xf32>, vector<32x128xf32>, vector<8x128xf32> -> vector<8x128xf32>
    %47 = vector.broadcast %35 : vector<1x128xf32> to vector<8x128xf32>
    %48 = arith.addf %46, %47 : vector<8x128xf32>
    %cst_11 = arith.constant dense<0xFF800000> : vector<8xf32>
    %49 = vector.multi_reduction <maximumf>, %48, %cst_11 [1] : vector<8x128xf32> to vector<8xf32>
    %50 = vector.shape_cast %49 : vector<8xf32> to vector<8x1xf32>
    %51 = vector.broadcast %50 : vector<8x1xf32> to vector<8x128xf32>
    %52 = arith.subf %48, %51 : vector<8x128xf32>
    %53 = math.exp %52 : vector<8x128xf32>
    %cst_12 = arith.constant dense<0.000000e+00> : vector<8xf32>
    %54 = vector.multi_reduction <add>, %53, %cst_12 [1] : vector<8x128xf32> to vector<8xf32>
    %55 = vector.shape_cast %54 : vector<8xf32> to vector<8x1xf32>
    %56 = math.log %55 : vector<8x1xf32>
    %57 = vector.broadcast %56 : vector<8x1xf32> to vector<8x128xf32>
    %58 = arith.subf %52, %57 : vector<8x128xf32>
    %c0_13 = arith.constant 0 : index
    %c0_14 = arith.constant 0 : index
    %59 = vector.load %arg3[%c0_13, %c0_14] : memref<8x128xf32, #tpu.memory_space<vmem>>, vector<8x128xf32>
    tpu.vector_store %arg3[%c0_13, %c0_14], %58 {strides = array<i32>} : memref<8x128xf32, #tpu.memory_space<vmem>>, vector<8x128xf32>,
    return
  }
}

</mosaic_0001>

<llo_original>
// kernel: tpu_custom_call.1
$region0: #{tpu_custom_call.1}
  #allocation0 [shape = 'u32[]', space=smem, size = 0x4, offset = 0x4, fixed_abs, tag = 'smem constant byte address 0x4 - core index']
  #allocation1 [shape = 'u32[72,128]{1,0:T(1,128)}', space=vmem, size = 0x9000, scoped, tag = 'internal scratch']
  %s0 = inlined_call_operand.vmem [shape: s32[8,4], index: 0, kind: input, shape index: {}]
  %s1 = inlined_call_operand.vmem [shape: f32[128,32], index: 1, kind: input, shape index: {}]
  %s2 = inlined_call_operand.vmem [shape: f32[33,192], index: 2, kind: input, shape index: {}]
  %s3 = inlined_call_operand.hbm [shape: f32[8,128], index: 3, kind: output, shape index: {}]
  %s4 = sld [smem:[#allocation0]]
  $region22: #{tpu_custom_call.1} parent=0
    _
  %s6 = ssub.s32 1, %s4
  %s7 = scalar_select 0, %s6, %s4
  $region1: #{tpu_custom_call.1} parent=0
    #allocation2 [shape = 'u8[4096]{0}', space=vmem, size = 0x1000, scoped, tag = 'output window, operand 0, single buffered']
    #allocation3 [shape = 's32[1]{0}', space=sflag, size = 0x4, scoped, tag = 'scoped memory for tpu_custom_call.1']
    %8 = vsyncpa [#allocation3], 0
    // Predicated region
    $region2: #{tpu_custom_call.1} parent=1 // pred_check
      _
    $region3: #{tpu_custom_call.1} parent=1 // pred_check_branch
      %10 = sbr.rel (0) target = $region5
    $region4: #{tpu_custom_call.1} parent=1 // pred_region
      _
    $region5: #{tpu_custom_call.1} parent=1 // pred_fallthru
      _
    // Predicated region
    $region6: #{tpu_custom_call.1} parent=1 // pred_check
      _
    $region7: #{tpu_custom_call.1} parent=1 // pred_check_branch
      %12 = sbr.rel (0) target = $region9
    $region8: #{tpu_custom_call.1} parent=1 // pred_region
      _
    $region9: #{tpu_custom_call.1} parent=1 // pred_fallthru
      _
    // Predicated region
    $region10: #{tpu_custom_call.1} parent=1 // pred_check
      _
    $region11: #{tpu_custom_call.1} parent=1 // pred_check_branch
      %14 = sbr.rel (0) target = $region13
    $region12: #{tpu_custom_call.1} parent=1 // pred_region
      _
    $region13: #{tpu_custom_call.1} parent=1 // pred_fallthru
      _
    %v15 = vld [vmem:[%s0] sm:$0xff]
    %v16 = vld [vmem:[%s2] sm:$0xff]
    %v17 = vld [vmem:[%s2 + $0x8] sm:$0xff]
    %v18 = vld [vmem:[%s2 + $0x10] sm:$0xff]
    %v19 = vld [vmem:[%s2 + $0x18] sm:$0xff]
    %v20 = vld [vmem:[%s2 + $0x20] sm:$0xff]
    %v21 = vld [vmem:[%s2 + $0x28] sm:$0xff]
    %v22 = vld [vmem:[%s2 + $0x30] sm:$0xff]
    %v23 = vld [vmem:[%s2 + $0x38] sm:$0xff]
    %v24 = vld [vmem:[%s2 + $0x40] sm:$0x1]
    %v25 = vld [vmem:[%s2 + $0x48] sm:$0x1]
    %v26 = vlaneseq
    %v27 = vand.u32 %v26, 127
    %28 = vset.pattern.permute.xlu0 0
    %29 = vperm.xlu0 %28, %v15
    %v30 = vpop.permute.xlu0 %29
    %vm31 = vcmp.eq.s32.totalorder %v27, %v30
    %v32 = vsel %vm31, 1, 0
    %v33 = vcvt.s32.f32 %v32
    %v34 = vadd.f32 %v33, 0.0
    %35 = vset.pattern.permute.xlu0 1
    %36 = vperm.xlu0 %35, %v15
    %v37 = vpop.permute.xlu0 %36
    %vm38 = vcmp.eq.s32.totalorder %v27, %v37
    %v39 = vsel %vm38, 1, 0
    %v40 = vcvt.s32.f32 %v39
    %v41 = vadd.f32 %v34, %v40
    %42 = vset.pattern.permute.xlu0 2
    %43 = vperm.xlu0 %42, %v15
    %v44 = vpop.permute.xlu0 %43
    %vm45 = vcmp.eq.s32.totalorder %v27, %v44
    %v46 = vsel %vm45, 1, 0
    %v47 = vcvt.s32.f32 %v46
    %v48 = vadd.f32 %v41, %v47
    %49 = vset.pattern.permute.xlu0 3
    %50 = vperm.xlu0 %49, %v15
    %v51 = vpop.permute.xlu0 %50
    %vm52 = vcmp.eq.s32.totalorder %v27, %v51
    %v53 = vsel %vm52, 1, 0
    %v54 = vcvt.s32.f32 %v53
    %v55 = vadd.f32 %v48, %v54
    %v56 = vld [vmem:[%s1] sm:$0xff]
    %v57 = vld [vmem:[%s1 + $0x8] sm:$0xff]
    %v58 = vld [vmem:[%s1 + $0x10] sm:$0xff]
    %v59 = vld [vmem:[%s1 + $0x18] sm:$0xff]
    %v60 = vld [vmem:[%s1 + $0x20] sm:$0xff]
    %v61 = vld [vmem:[%s1 + $0x28] sm:$0xff]
    %v62 = vld [vmem:[%s1 + $0x30] sm:$0xff]
    %v63 = vld [vmem:[%s1 + $0x38] sm:$0xff]
    %v64 = vld [vmem:[%s1 + $0x40] sm:$0xff]
    %v65 = vld [vmem:[%s1 + $0x48] sm:$0xff]
    %v66 = vld [vmem:[%s1 + $0x50] sm:$0xff]
    %v67 = vld [vmem:[%s1 + $0x58] sm:$0xff]
    %v68 = vld [vmem:[%s1 + $0x60] sm:$0xff]
    %v69 = vld [vmem:[%s1 + $0x68] sm:$0xff]
    %v70 = vld [vmem:[%s1 + $0x70] sm:$0xff]
    %v71 = vld [vmem:[%s1 + $0x78] sm:$0xff]
    %72 = vmatpush.msra.mxu0 %v71
    %73 = vmatpush.msra.mxu0 %v70
    %74 = vmatpush.msra.mxu0 %v69
    %75 = vmatpush.msra.mxu0 %v68
    %76 = vmatpush.msra.mxu0 %v67
    %77 = vmatpush.msra.mxu0 %v66
    %78 = vmatpush.msra.mxu0 %v65
    %79 = vmatpush.msra.mxu0 %v64
    %80 = vmatpush.msra.mxu0 %v63
    %81 = vmatpush.msra.mxu0 %v62
    %82 = vmatpush.msra.mxu0 %v61
    %83 = vmatpush.msra.mxu0 %v60
    %84 = vmatpush.msra.mxu0 %v59
    %85 = vmatpush.msra.mxu0 %v58
    %86 = vmatpush.msra.mxu0 %v57
    %87 = vmatpush.msra.mxu0 %v56
    %88 = vmatmul.f32.gmra.mxu0 %v55
    %v89 = vpop.f32.mrf.mxu0
    %v90 = vadd.f32 0.0, %v89
    %91 = vdwg.mxu0
    %v92 = vperm.slane %v24, 0
    %vm93 = vcmask 261120
    %v95 = vsel %vm93, %v90, 0
    %97 = vmatpush.msra.mxu0 0.0
    %98 = vmatpush.msra.mxu0 0.0
    %99 = vmatpush.msra.mxu0 0.0
    %100 = vmatpush.msra.mxu0 0.0
    %101 = vmatpush.msra.mxu0 0.0
    %102 = vmatpush.msra.mxu0 0.0
    %103 = vmatpush.msra.mxu0 0.0
    %104 = vmatpush.msra.mxu0 0.0
    %105 = vmatpush.msra.mxu0 0.0
    %106 = vmatpush.msra.mxu0 0.0
    %107 = vmatpush.msra.mxu0 0.0
    %108 = vmatpush.msra.mxu0 0.0
    %109 = vmatpush.msra.mxu0 %v22
    %110 = vmatpush.msra.mxu0 %v20
    %111 = vmatpush.msra.mxu0 %v18
    %112 = vmatpush.msra.mxu0 %v16
    %113 = vmatmul.f32.gmra.mxu0 %v95
    %v114 = vpop.f32.mrf.mxu0
    %v115 = vadd.f32 %v92, %v114
    %116 = vdwg.mxu0
    %v117 = vmax.f32 %v115, 0.0
    %122 = vrot.lane.b32.xlu0 %v16, 96
    %v123 = vpop.permute.xlu0 %122
    %124 = vrot.lane.b32.xlu0 %v18, 96
    %v125 = vpop.permute.xlu0 %124
    %126 = vrot.lane.b32.xlu0 %v20, 96
    %v127 = vpop.permute.xlu0 %126
    %128 = vrot.lane.b32.xlu0 %v22, 96
    %v129 = vpop.permute.xlu0 %128
    %135 = vrot.lane.b32.xlu0 %v92, 96
    %v136 = vpop.permute.xlu0 %135
    %v139 = vsel %vm93, %v117, 0
    %141 = vmatpush.msra.mxu0 0.0
    %142 = vmatpush.msra.mxu0 0.0
    %143 = vmatpush.msra.mxu0 0.0
    %144 = vmatpush.msra.mxu0 0.0
    %145 = vmatpush.msra.mxu0 0.0
    %146 = vmatpush.msra.mxu0 0.0
    %147 = vmatpush.msra.mxu0 0.0
    %148 = vmatpush.msra.mxu0 0.0
    %149 = vmatpush.msra.mxu0 0.0
    %150 = vmatpush.msra.mxu0 0.0
    %151 = vmatpush.msra.mxu0 0.0
    %152 = vmatpush.msra.mxu0 0.0
    %153 = vmatpush.msra.mxu0 %v129
    %154 = vmatpush.msra.mxu0 %v127
    %155 = vmatpush.msra.mxu0 %v125
    %156 = vmatpush.msra.mxu0 %v123
    %157 = vmatmul.f32.gmra.mxu0 %v139
    %v158 = vpop.f32.mrf.mxu0
    %v159 = vadd.f32 %v136, %v158
    %160 = vdwg.mxu0
    %v161 = vmax.f32 %v159, 0.0
    %v162 = vperm.slane %v25, 0
    %167 = vrot.lane.b32.xlu0 %v16, 64
    %v168 = vpop.permute.xlu0 %167
    %169 = vrot.lane.b32.xlu0 %v17, 64
    %v170 = vpop.permute.xlu0 %169
    %171 = vrot.lane.b32.xlu0 %v18, 64
    %v172 = vpop.permute.xlu0 %171
    %173 = vrot.lane.b32.xlu0 %v19, 64
    %v174 = vpop.permute.xlu0 %173
    %175 = vrot.lane.b32.xlu0 %v20, 64
    %v176 = vpop.permute.xlu0 %175
    %177 = vrot.lane.b32.xlu0 %v21, 64
    %v178 = vpop.permute.xlu0 %177
    %179 = vrot.lane.b32.xlu0 %v22, 64
    %v180 = vpop.permute.xlu0 %179
    %181 = vrot.lane.b32.xlu0 %v23, 64
    %v182 = vpop.permute.xlu0 %181
    %vm183 = vcmask 523264
    %v184 = vsel %vm183, %v168, %v170
    %v185 = vsel %vm183, %v172, %v174
    %v186 = vsel %vm183, %v176, %v178
    %v187 = vsel %vm183, %v180, %v182
    %193 = vrot.lane.b32.xlu0 %v92, 64
    %v194 = vpop.permute.xlu0 %193
    %195 = vrot.lane.b32.xlu0 %v162, 64
    %v196 = vpop.permute.xlu0 %195
    %v197 = vsel %vm183, %v194, %v196
    %v200 = vsel %vm93, %v161, 0
    %202 = vmatpush.msra.mxu0 0.0
    %203 = vmatpush.msra.mxu0 0.0
    %204 = vmatpush.msra.mxu0 0.0
    %205 = vmatpush.msra.mxu0 0.0
    %206 = vmatpush.msra.mxu0 0.0
    %207 = vmatpush.msra.mxu0 0.0
    %208 = vmatpush.msra.mxu0 0.0
    %209 = vmatpush.msra.mxu0 0.0
    %210 = vmatpush.msra.mxu0 0.0
    %211 = vmatpush.msra.mxu0 0.0
    %212 = vmatpush.msra.mxu0 0.0
    %213 = vmatpush.msra.mxu0 0.0
    %214 = vmatpush.msra.mxu0 %v187
    %215 = vmatpush.msra.mxu0 %v186
    %216 = vmatpush.msra.mxu0 %v185
    %217 = vmatpush.msra.mxu0 %v184
    %218 = vmatmul.f32.gmra.mxu0 %v200
    %v219 = vpop.f32.mrf.mxu0
    %v220 = vadd.f32 %v197, %v219
    %221 = vdwg.mxu0
    %222 = vmax.xlane.f32.xlu0 %v220
    %v223 = vpop.xlane.xlu0 %222
    %v224 = vsub.f32 %v220, %v223
    %v225 = vmul.f32 %v224, 1.442695
    %v226 = vpow.pop %v225
    %227 = vadd.xlane.f32.xlu0 %v226
    %v228 = vpop.xlane.xlu0 %227
    %v229 = vlog2.pop %v228
    %v230 = vmul.f32 %v229, 0.6931472
    %v231 = vsub.f32 %v224, %v230
    %232 = vst [vmem:[#allocation2] sm:$0xff] %v231
    // Predicated region
    $region14: #{tpu_custom_call.1} parent=1 // pred_check
      _
    $region15: #{tpu_custom_call.1} parent=1 // pred_check_branch
      %234 = sbr.rel (0) target = $region17
    $region16: #{tpu_custom_call.1} parent=1 // pred_region
      %236 = vsyncadd [#allocation3], 0
      %s238 = sshll.u32 [#allocation2], 4
      %s239 = int_to_ptr.vmem [resolvable:$true] %s238
      %s240 = sshll.u32 %s3, 4
      %s241 = int_to_ptr.hbm [resolvable:$true] %s240
      %243 = dma.vmem_to_hbm [thread:$0]  %s239, 128, %s241, [#allocation3]
    $region17: #{tpu_custom_call.1} parent=1 // pred_fallthru
      _
    // Predicated region
    $region18: #{tpu_custom_call.1} parent=1 // pred_check
      _
    $region19: #{tpu_custom_call.1} parent=1 // pred_check_branch
      %245 = sbr.rel (0) target = $region21
    $region20: #{tpu_custom_call.1} parent=1 // pred_region
      %247 = dma.done [#allocation3], 128
    $region21: #{tpu_custom_call.1} parent=1 // pred_fallthru
      _
    %248 = vsyncpa [#allocation3], 1

</llo_original>
